<compile_context>
chip_gen: v7x
topology: tpu7x:2x2x1
jax: 0.10.0
libtpu: 0.0.40
codegen_flags: <defaults>
</compile_context>

<pallas_src>
import functools

import jax
import jax.numpy as jnp
from jax.experimental import pallas as pl
from jax.experimental.pallas import tpu as pltpu


def _round_up(x, m):
    return (x + m - 1) // m * m


def _dense_kernel(x_ref, gamma_ref, beta_ref, w_ref, b_ref, o_ref, *, eps, cin_true):
    # Per grid step (i, j):
    #   x_ref:     (tm, Cin_p)  input rows tile (zero-padded lanes)
    #   gamma_ref: (1, Cin_p)   f32 LayerNorm weight (zero-padded)
    #   beta_ref:  (1, Cin_p)   f32 LayerNorm bias   (zero-padded)
    #   w_ref:     (Cin_p, tn)  bf16 Linear weight tile (zero-padded rows)
    #   b_ref:     (1, tn)      f32 Linear bias tile
    #   o_ref:     (tm, tn)     output tile
    x = x_ref[...].astype(jnp.float32)
    cin_pad = x.shape[-1]
    inv_cin = 1.0 / cin_true

    # --- LayerNorm over the true Cin (torch default: biased var, eps inside rsqrt).
    # Padded lanes of x are zero, so the sum already equals the true-lane sum.
    mean = jnp.sum(x, axis=-1, keepdims=True) * inv_cin
    centered = x - mean
    if cin_true != cin_pad:
        # Mask padded lanes out of the variance (they would contribute mean**2).
        lane = jax.lax.broadcasted_iota(jnp.int32, x.shape, dimension=1)
        centered = jnp.where(lane < cin_true, centered, 0.0)
    var = jnp.sum(centered * centered, axis=-1, keepdims=True) * inv_cin
    xn = centered * jax.lax.rsqrt(var + eps)
    y = xn * gamma_ref[...] + beta_ref[...]   # padded lanes -> 0 (gamma/beta padded with 0)

    # --- ReLU ---
    y = jnp.maximum(y, 0.0)

    # --- Linear on the MXU: bf16 operands, f32 accumulation ---
    out = jnp.dot(y.astype(jnp.bfloat16), w_ref[...],
                  preferred_element_type=jnp.float32)
    out = out + b_ref[...]

    o_ref[...] = out.astype(o_ref.dtype)


def dense_forward(x, gamma, beta, weight, bias, *, eps=1e-5,
                  tm_target=256, tn_target=512,
                  vmem_limit_bytes=48 * 1024 * 1024):
    """LayerNorm -> ReLU -> Linear.  x: (..., Cin) -> (..., Cout).

    weight: torch-style (Cout, Cin); bias: (Cout,); gamma/beta: (Cin,).
    """
    cin = x.shape[-1]
    cout = weight.shape[0]
    lead = x.shape[:-1]
    x2d = x.reshape(-1, cin)
    n = x2d.shape[0]

    # Lane-dense feature padding (multiples of 128).
    cin_p = _round_up(cin, 128)
    tn = min(tn_target, _round_up(cout, 128))      # tn_target is a multiple of 128
    cout_p = _round_up(cout, tn)

    # Row tile: as large as tm_target (multiple of 8), clamped for small inputs,
    # then shrunk if the double-buffered working set would exceed a VMEM budget.
    tm = min(tm_target, _round_up(n, 8))
    budget = vmem_limit_bytes - 4 * 1024 * 1024    # leave headroom for compiler scratch
    def _working_set(tm_):
        # x (f32 in, double-buffered) + output (f32, double-buffered)
        # + weight tile (bf16, double-buffered) + gamma/beta/bias (negligible).
        return 2 * (tm_ * cin_p * 4) + 2 * (tm_ * tn * 4) + 2 * (cin_p * tn * 2)
    while tm > 8 and _working_set(tm) > budget:
        tm = max(8, _round_up(tm // 2, 8))
    n_p = _round_up(n, tm)

    # Pad / pre-cast operands outside the hot loop.
    x_pad = jnp.pad(x2d, ((0, n_p - n), (0, cin_p - cin)))
    gamma_p = jnp.pad(gamma.astype(jnp.float32), (0, cin_p - cin)).reshape(1, cin_p)
    beta_p = jnp.pad(beta.astype(jnp.float32), (0, cin_p - cin)).reshape(1, cin_p)
    # (Cout, Cin) -> (Cin_p, Cout_p) in bf16 for the MXU; padded rows are zero.
    w_t = jnp.pad(weight.T.astype(jnp.bfloat16),
                  ((0, cin_p - cin), (0, cout_p - cout)))
    bias_p = jnp.pad(bias.astype(jnp.float32), (0, cout_p - cout)).reshape(1, cout_p)

    kernel = functools.partial(_dense_kernel, eps=eps, cin_true=cin)

    # Cout axis innermost so the x tile (same block index across j) is reused
    # across weight tiles; both axes independent -> "parallel".
    grid = (n_p // tm, cout_p // tn)

    out2d = pl.pallas_call(
        kernel,
        out_shape=jax.ShapeDtypeStruct((n_p, cout_p), x.dtype),
        grid_spec=pltpu.PrefetchScalarGridSpec(
            num_scalar_prefetch=0,
            grid=grid,
            in_specs=[
                pl.BlockSpec((tm, cin_p), lambda i, j: (i, 0)),    # x rows tile
                pl.BlockSpec((1, cin_p), lambda i, j: (0, 0)),     # gamma (replicated)
                pl.BlockSpec((1, cin_p), lambda i, j: (0, 0)),     # beta  (replicated)
                pl.BlockSpec((cin_p, tn), lambda i, j: (0, j)),    # weight tile
                pl.BlockSpec((1, tn), lambda i, j: (0, j)),        # bias tile
            ],
            out_specs=pl.BlockSpec((tm, tn), lambda i, j: (i, j)),
        ),
        compiler_params=pltpu.CompilerParams(
            dimension_semantics=("parallel", "parallel"),
            vmem_limit_bytes=vmem_limit_bytes),
    )(x_pad, gamma_p, beta_p, w_t, bias_p)

    return out2d[:n, :cout].reshape(*lead, cout)


def _reference(x, gamma, beta, weight, bias, eps=1e-5):
    xf = x.astype(jnp.float32)
    mean = jnp.mean(xf, axis=-1, keepdims=True)
    var = jnp.mean((xf - mean) ** 2, axis=-1, keepdims=True)
    y = (xf - mean) * jax.lax.rsqrt(var + eps) * gamma + beta
    y = jnp.maximum(y, 0.0)
    return y @ weight.T + bias


if __name__ == "__main__":
    in_channel, out_channel = 32, 64
    batch, seq = 2, 8                      # 16 rows total

    key = jax.random.PRNGKey(0)
    kx, kw, kb = jax.random.split(key, 3)

    x = jax.random.normal(kx, (batch, seq, in_channel), dtype=jnp.float32)

    # Parameters (deterministic synthetic init, mirrors module shapes):
    gamma = jnp.ones((in_channel,), jnp.float32)      # LayerNorm.weight
    beta = jnp.zeros((in_channel,), jnp.float32)      # LayerNorm.bias
    bound = 1.0 / (in_channel ** 0.5)                 # torch Linear default range
    weight = jax.random.uniform(kw, (out_channel, in_channel),
                                minval=-bound, maxval=bound, dtype=jnp.float32)
    bias = jax.random.uniform(kb, (out_channel,),
                              minval=-bound, maxval=bound, dtype=jnp.float32)

    out = dense_forward(x, gamma, beta, weight, bias)
    jax.block_until_ready(out)

    ref = _reference(x, gamma, beta, weight, bias)
    assert out.shape == (batch, seq, out_channel)
    # Matmul operands are bf16 on the MXU (f32 accumulate) -> bf16-level tolerance.
    err = float(jnp.max(jnp.abs(out - ref)))
    assert jnp.allclose(out, ref, atol=2e-2, rtol=2e-2), err

    print("KERNEL_OK")
</pallas_src>

<mosaic_0001>
module attributes {stable_mosaic.version = 11 : i64} {
  func.func @_dense_kernel(%arg0: i32, %arg1: i32, %arg2: memref<16x128xf32, #tpu.memory_space<vmem>>, %arg3: memref<1x128xf32, #tpu.memory_space<vmem>>, %arg4: memref<1x128xf32, #tpu.memory_space<vmem>>, %arg5: memref<128x128xbf16, #tpu.memory_space<vmem>>, %arg6: memref<1x128xf32, #tpu.memory_space<vmem>>, %arg7: memref<16x128xf32, #tpu.memory_space<vmem>>) attributes {dimension_semantics = [#tpu.dimension_semantics<parallel>, #tpu.dimension_semantics<parallel>], iteration_bounds = array<i64: 1, 1>, scalar_prefetch = 0 : i64, scratch_operands = 0 : i64, tpu.core_type = #tpu.core_type<tc>, window_params = [{transform_indices = @transform_0, window_bounds = array<i64: 16, 128>}, {pipeline_mode = #tpu.pipeline_mode<synchronous>, transform_indices = @transform_1, window_bounds = array<i64: 1, 128>}, {pipeline_mode = #tpu.pipeline_mode<synchronous>, transform_indices = @transform_2, window_bounds = array<i64: 1, 128>}, {transform_indices = @transform_3, window_bounds = array<i64: 128, 128>}, {transform_indices = @transform_4, window_bounds = array<i64: 1, 128>}, {transform_indices = @transform_5, window_bounds = array<i64: 16, 128>}]} {
    %c0 = arith.constant 0 : index
    %c0_0 = arith.constant 0 : index
    %0 = vector.load %arg2[%c0, %c0_0] : memref<16x128xf32, #tpu.memory_space<vmem>>, vector<16x128xf32>
    %cst = arith.constant dense<0.000000e+00> : vector<16xf32>
    %1 = vector.multi_reduction <add>, %0, %cst [1] : vector<16x128xf32> to vector<16xf32>
    %2 = vector.shape_cast %1 : vector<16xf32> to vector<16x1xf32>
    %cst_1 = arith.constant 3.125000e-02 : f32
    %3 = vector.broadcast %cst_1 : f32 to vector<16x1xf32>
    %4 = arith.mulf %2, %3 : vector<16x1xf32>
    %5 = vector.broadcast %4 : vector<16x1xf32> to vector<16x128xf32>
    %6 = arith.subf %0, %5 : vector<16x128xf32>
    %7 = tpu.iota {dimensions = array<i32: 1>} : vector<16x128xi32>
    %c32_i32 = arith.constant 32 : i32
    %8 = vector.broadcast %c32_i32 : i32 to vector<16x128xi32>
    %9 = arith.cmpi slt, %7, %8 : vector<16x128xi32>
    %cst_2 = arith.constant 0.000000e+00 : f32
    %10 = vector.broadcast %cst_2 : f32 to vector<16x128xf32>
    %11 = arith.select %9, %6, %10 : vector<16x128xi1>, vector<16x128xf32>
    %12 = arith.mulf %11, %11 : vector<16x128xf32>
    %cst_3 = arith.constant dense<0.000000e+00> : vector<16xf32>
    %13 = vector.multi_reduction <add>, %12, %cst_3 [1] : vector<16x128xf32> to vector<16xf32>
    %14 = vector.shape_cast %13 : vector<16xf32> to vector<16x1xf32>
    %cst_4 = arith.constant 3.125000e-02 : f32
    %15 = vector.broadcast %cst_4 : f32 to vector<16x1xf32>
    %16 = arith.mulf %14, %15 : vector<16x1xf32>
    %cst_5 = arith.constant 9.99999974E-6 : f32
    %17 = vector.broadcast %cst_5 : f32 to vector<16x1xf32>
    %18 = arith.addf %16, %17 : vector<16x1xf32>
    %19 = math.rsqrt %18 : vector<16x1xf32>
    %20 = vector.broadcast %19 : vector<16x1xf32> to vector<16x128xf32>
    %21 = arith.mulf %11, %20 : vector<16x128xf32>
    %c0_6 = arith.constant 0 : index
    %c0_7 = arith.constant 0 : index
    %22 = vector.load %arg3[%c0_6, %c0_7] : memref<1x128xf32, #tpu.memory_space<vmem>>, vector<1x128xf32>
    %23 = vector.broadcast %22 : vector<1x128xf32> to vector<16x128xf32>
    %24 = arith.mulf %21, %23 : vector<16x128xf32>
    %c0_8 = arith.constant 0 : index
    %c0_9 = arith.constant 0 : index
    %25 = vector.load %arg4[%c0_8, %c0_9] : memref<1x128xf32, #tpu.memory_space<vmem>>, vector<1x128xf32>
    %26 = vector.broadcast %25 : vector<1x128xf32> to vector<16x128xf32>
    %27 = arith.addf %24, %26 : vector<16x128xf32>
    %cst_10 = arith.constant 0.000000e+00 : f32
    %28 = vector.broadcast %cst_10 : f32 to vector<16x128xf32>
    %29 = arith.maximumf %27, %28 : vector<16x128xf32>
    %30 = arith.truncf %29 : vector<16x128xf32> to vector<16x128xbf16>
    %c0_11 = arith.constant 0 : index
    %c0_12 = arith.constant 0 : index
    %31 = vector.load %arg5[%c0_11, %c0_12] : memref<128x128xbf16, #tpu.memory_space<vmem>>, vector<128x128xbf16>
    %cst_13 = arith.constant dense<0.000000e+00> : vector<16x128xf32>
    %32 = tpu.matmul %30, %31, %cst_13 {dimension_numbers = #tpu.dot_dimension_numbers<[1], [0], [0], [1], [0, 0, 1, 1], [], []>} : vector<16x128xbf16>, vector<128x128xbf16>, vector<16x128xf32> -> vector<16x128xf32>
    %c0_14 = arith.constant 0 : index
    %c0_15 = arith.constant 0 : index
    %33 = vector.load %arg6[%c0_14, %c0_15] : memref<1x128xf32, #tpu.memory_space<vmem>>, vector<1x128xf32>
    %34 = vector.broadcast %33 : vector<1x128xf32> to vector<16x128xf32>
    %35 = arith.addf %32, %34 : vector<16x128xf32>
    %c0_16 = arith.constant 0 : index
    %c0_17 = arith.constant 0 : index
    %36 = vector.load %arg7[%c0_16, %c0_17] : memref<16x128xf32, #tpu.memory_space<vmem>>, vector<16x128xf32>
    tpu.vector_store %arg7[%c0_16, %c0_17], %35 {strides = array<i32>} : memref<16x128xf32, #tpu.memory_space<vmem>>, vector<16x128xf32>,
    return
  }
  func.func @transform_0(%arg0: i32, %arg1: i32) -> (i32, i32) {
    %c0_i32 = arith.constant 0 : i32
    %c0_i32_0 = arith.constant 0 : i32
    return %arg0, %c0_i32 : i32, i32
  }
  func.func @transform_1(%arg0: i32, %arg1: i32) -> (i32, i32) {
    %c0_i32 = arith.constant 0 : i32
    %c0_i32_0 = arith.constant 0 : i32
    %c0_i32_1 = arith.constant 0 : i32
    return %c0_i32, %c0_i32_0 : i32, i32
  }
  func.func @transform_2(%arg0: i32, %arg1: i32) -> (i32, i32) {
    %c0_i32 = arith.constant 0 : i32
    %c0_i32_0 = arith.constant 0 : i32
    %c0_i32_1 = arith.constant 0 : i32
    return %c0_i32, %c0_i32_0 : i32, i32
  }
  func.func @transform_3(%arg0: i32, %arg1: i32) -> (i32, i32) {
    %c0_i32 = arith.constant 0 : i32
    %c0_i32_0 = arith.constant 0 : i32
    return %c0_i32, %arg1 : i32, i32
  }
  func.func @transform_4(%arg0: i32, %arg1: i32) -> (i32, i32) {
    %c0_i32 = arith.constant 0 : i32
    %c0_i32_0 = arith.constant 0 : i32
    return %c0_i32, %arg1 : i32, i32
  }
  func.func @transform_5(%arg0: i32, %arg1: i32) -> (i32, i32) {
    %c0_i32 = arith.constant 0 : i32
    return %arg0, %arg1 : i32, i32
  }
}

</mosaic_0001>

<llo_original>
// kernel: tpu_custom_call.1
$region0: #{tpu_custom_call.1}
  #allocation0 [shape = 'u32[]', space=smem, size = 0x4, offset = 0x4, fixed_abs, tag = 'smem constant byte address 0x4 - core index']
  #allocation1 [shape = 'u32[144,128]{1,0:T(1,128)}', space=vmem, size = 0x12000, scoped, tag = 'internal scratch']
  %s0 = inlined_call_operand.hbm [shape: f32[16,128], index: 0, kind: input, shape index: {}]
  %s1 = inlined_call_operand.vmem [shape: f32[1,128], index: 1, kind: input, shape index: {}]
  %s2 = inlined_call_operand.vmem [shape: f32[1,128], index: 2, kind: input, shape index: {}]
  %s3 = inlined_call_operand.hbm [shape: bf16[128,128], index: 3, kind: input, shape index: {}]
  %s4 = inlined_call_operand.vmem [shape: f32[1,128], index: 4, kind: input, shape index: {}]
  %s5 = inlined_call_operand.hbm [shape: f32[16,128], index: 5, kind: output, shape index: {}]
  %s6 = sld [smem:[#allocation0]]
  $region38: #{tpu_custom_call.1} parent=0
    _
  %s8 = ssub.s32 1, %s6
  %s9 = scalar_select 0, %s8, %s6
  $region1: #{tpu_custom_call.1} parent=0
    #allocation2 [shape = 'u8[8192]{0}', space=vmem, size = 0x2000, scoped, tag = 'input window, operand 0, single buffered']
    #allocation3 [shape = 's32[1]{0}', space=sflag, size = 0x4, scoped, tag = 'scoped memory for tpu_custom_call.1']
    #allocation4 [shape = 's32[1]{0}', space=sflag, size = 0x4, scoped, tag = 'scoped memory for tpu_custom_call.1']
    #allocation5 [shape = 'u8[32768]{0}', space=vmem, size = 0x8000, scoped, tag = 'input window, operand 3, single buffered']
    #allocation6 [shape = 's32[1]{0}', space=sflag, size = 0x4, scoped, tag = 'scoped memory for tpu_custom_call.1']
    #allocation7 [shape = 'u8[8192]{0}', space=vmem, size = 0x2000, scoped, tag = 'output window, operand 0, single buffered']
    %10 = vsyncpa [#allocation3], 0
    %11 = vsyncpa [#allocation6], 0
    %12 = vsyncpa [#allocation4], 0
    // Predicated region
    $region2: #{tpu_custom_call.1} parent=1 // pred_check
      _
    $region3: #{tpu_custom_call.1} parent=1 // pred_check_branch
      %14 = sbr.rel (0) target = $region5
    $region4: #{tpu_custom_call.1} parent=1 // pred_region
      %s16 = ssub.s32 256, 256
      %17 = vsyncadd [#allocation3], %s16
      %s18 = sshll.u32 [#allocation2], 4
      %s19 = int_to_ptr.vmem [resolvable:$true] %s18
      %24 = dma.hbm_to_vmem [thread:$0]  %s0, 256, %s19, [#allocation3], 128, 128, 8
    $region5: #{tpu_custom_call.1} parent=1 // pred_fallthru
      _
    // Predicated region
    $region6: #{tpu_custom_call.1} parent=1 // pred_check
      _
    $region7: #{tpu_custom_call.1} parent=1 // pred_check_branch
      %26 = sbr.rel (0) target = $region9
    $region8: #{tpu_custom_call.1} parent=1 // pred_region
      _
    $region9: #{tpu_custom_call.1} parent=1 // pred_fallthru
      _
    // Predicated region
    $region10: #{tpu_custom_call.1} parent=1 // pred_check
      _
    $region11: #{tpu_custom_call.1} parent=1 // pred_check_branch
      %28 = sbr.rel (0) target = $region13
    $region12: #{tpu_custom_call.1} parent=1 // pred_region
      _
    $region13: #{tpu_custom_call.1} parent=1 // pred_fallthru
      _
    // Predicated region
    $region14: #{tpu_custom_call.1} parent=1 // pred_check
      _
    $region15: #{tpu_custom_call.1} parent=1 // pred_check_branch
      %30 = sbr.rel (0) target = $region17
    $region16: #{tpu_custom_call.1} parent=1 // pred_region
      %s32 = ssub.s32 1024, 1024
      %33 = vsyncadd [#allocation6], %s32
      %s34 = sshll.u32 [#allocation5], 4
      %s35 = int_to_ptr.vmem [resolvable:$true] %s34
      %40 = dma.hbm_to_vmem [thread:$0]  %s3, 1024, %s35, [#allocation6], 64, 64, 4
    $region17: #{tpu_custom_call.1} parent=1 // pred_fallthru
      _
    // Predicated region
    $region18: #{tpu_custom_call.1} parent=1 // pred_check
      _
    $region19: #{tpu_custom_call.1} parent=1 // pred_check_branch
      %42 = sbr.rel (0) target = $region21
    $region20: #{tpu_custom_call.1} parent=1 // pred_region
      _
    $region21: #{tpu_custom_call.1} parent=1 // pred_fallthru
      _
    // Predicated region
    $region22: #{tpu_custom_call.1} parent=1 // pred_check
      _
    $region23: #{tpu_custom_call.1} parent=1 // pred_check_branch
      %44 = sbr.rel (0) target = $region25
    $region24: #{tpu_custom_call.1} parent=1 // pred_region
      %45 = dma.done [#allocation3], 256
    $region25: #{tpu_custom_call.1} parent=1 // pred_fallthru
      _
    // Predicated region
    $region26: #{tpu_custom_call.1} parent=1 // pred_check
      _
    $region27: #{tpu_custom_call.1} parent=1 // pred_check_branch
      %47 = sbr.rel (0) target = $region29
    $region28: #{tpu_custom_call.1} parent=1 // pred_region
      %48 = dma.done [#allocation6], 1024
    $region29: #{tpu_custom_call.1} parent=1 // pred_fallthru
      _
    %v50 = vld [vmem:[#allocation2] sm:$0xff]
    %v51 = vld [vmem:[#allocation2 + $0x8] sm:$0xff]
    %52 = vadd.xlane.f32.xlu0 %v50
    %v53 = vpop.xlane.xlu0 %52
    %54 = vadd.xlane.f32.xlu0 %v51
    %v55 = vpop.xlane.xlu0 %54
    %v56 = vmul.f32 %v53, 0.03125
    %v57 = vmul.f32 %v55, 0.03125
    %v58 = vsub.f32 %v50, %v56
    %v59 = vsub.f32 %v51, %v57
    %v60 = vlaneseq
    %v61 = vand.u32 %v60, 127
    %vm62 = vcmp.lt.s32.totalorder %v61, 32
    %v63 = vsel %vm62, %v58, 0.0
    %v64 = vsel %vm62, %v59, 0.0
    %v65 = vmul.f32 %v63, %v63
    %v66 = vmul.f32 %v64, %v64
    %67 = vadd.xlane.f32.xlu0 %v65
    %v68 = vpop.xlane.xlu0 %67
    %69 = vadd.xlane.f32.xlu0 %v66
    %v70 = vpop.xlane.xlu0 %69
    %v71 = vmul.f32 %v68, 0.03125
    %v72 = vmul.f32 %v70, 0.03125
    %v73 = vadd.f32 %v71, 1e-05
    %v74 = vadd.f32 %v72, 1e-05
    %v75 = vrsqrt.pop %v73
    %v76 = vrsqrt.pop %v74
    %v77 = vmul.f32 %v63, %v75
    %v78 = vmul.f32 %v64, %v76
    %v79 = vld [vmem:[%s1] sm:$0x1]
    %v81 = vlaneseq
    %v82 = vshrl.u32 %v81, 7
    %v83 = vsub.s32 0, %v82
    %v84 = vrot.slane %v79, %v83
    %v86 = vmul.f32 %v77, %v84
    %v87 = vmul.f32 %v78, %v84
    %v88 = vld [vmem:[%s2] sm:$0x1]
    %v90 = vlaneseq
    %v91 = vshrl.u32 %v90, 7
    %v92 = vsub.s32 0, %v91
    %v93 = vrot.slane %v88, %v92
    %v95 = vadd.f32 %v86, %v93
    %v96 = vadd.f32 %v87, %v93
    %v97 = vmax.f32 %v95, 0.0
    %v98 = vmax.f32 %v96, 0.0
    %v99 = vpack.c.bf16 %v98, %v97
    %v100 = vld [vmem:[#allocation5] sm:$0xf]
    %v101 = vld [vmem:[#allocation5 + $0x4] sm:$0xf]
    %v102 = vld [vmem:[#allocation5 + $0x8] sm:$0xf]
    %v103 = vld [vmem:[#allocation5 + $0xc] sm:$0xf]
    %v104 = vld [vmem:[#allocation5 + $0x10] sm:$0xf]
    %v105 = vld [vmem:[#allocation5 + $0x14] sm:$0xf]
    %v106 = vld [vmem:[#allocation5 + $0x18] sm:$0xf]
    %v107 = vld [vmem:[#allocation5 + $0x1c] sm:$0xf]
    %v108 = vld [vmem:[#allocation5 + $0x20] sm:$0xf]
    %v109 = vld [vmem:[#allocation5 + $0x24] sm:$0xf]
    %v110 = vld [vmem:[#allocation5 + $0x28] sm:$0xf]
    %v111 = vld [vmem:[#allocation5 + $0x2c] sm:$0xf]
    %v112 = vld [vmem:[#allocation5 + $0x30] sm:$0xf]
    %v113 = vld [vmem:[#allocation5 + $0x34] sm:$0xf]
    %v114 = vld [vmem:[#allocation5 + $0x38] sm:$0xf]
    %v115 = vld [vmem:[#allocation5 + $0x3c] sm:$0xf]
    %v116 = vld [vmem:[%s4] sm:$0x1]
    %v118 = vlaneseq
    %v119 = vshrl.u32 %v118, 7
    %v120 = vsub.s32 0, %v119
    %v121 = vrot.slane %v116, %v120
    %v139 = vunpack.c.l.b16 %v100
    %v140 = vunpack.c.l.b16 %v101
    %v141 = vunpack.c.l.b16 %v102
    %v142 = vunpack.c.l.b16 %v103
    %v143 = vunpack.c.l.b16 %v104
    %v144 = vunpack.c.l.b16 %v105
    %v145 = vunpack.c.l.b16 %v106
    %v146 = vunpack.c.l.b16 %v107
    %v147 = vunpack.c.l.b16 %v108
    %v148 = vunpack.c.l.b16 %v109
    %v149 = vunpack.c.l.b16 %v110
    %v150 = vunpack.c.l.b16 %v111
    %v151 = vunpack.c.l.b16 %v112
    %v152 = vunpack.c.l.b16 %v113
    %v153 = vunpack.c.l.b16 %v114
    %v154 = vunpack.c.l.b16 %v115
    %v155 = vpack.c.b16 %v140, %v139
    %v156 = vpack.c.b16 %v142, %v141
    %v157 = vpack.c.b16 %v144, %v143
    %v158 = vpack.c.b16 %v146, %v145
    %v159 = vpack.c.b16 %v148, %v147
    %v160 = vpack.c.b16 %v150, %v149
    %v161 = vpack.c.b16 %v152, %v151
    %v162 = vpack.c.b16 %v154, %v153
    %171 = vmatprep.subr.bf16.mxu0 0
    %172 = vmatpush1.bf16.msra.mxu0 %v155
    %173 = vmatprep.subr.bf16.mxu0 0
    %174 = vmatpush1.bf16.msra.mxu0 %v156
    %175 = vmatprep.subr.bf16.mxu0 0
    %176 = vmatpush1.bf16.msra.mxu0 %v157
    %177 = vmatprep.subr.bf16.mxu0 0
    %178 = vmatpush1.bf16.msra.mxu0 %v158
    %179 = vmatprep.subr.bf16.mxu0 0
    %180 = vmatpush1.bf16.msra.mxu0 %v159
    %181 = vmatprep.subr.bf16.mxu0 0
    %182 = vmatpush1.bf16.msra.mxu0 %v160
    %183 = vmatprep.subr.bf16.mxu0 0
    %184 = vmatpush1.bf16.msra.mxu0 %v161
    %185 = vmatprep.subr.bf16.mxu0 0
    %186 = vmatpush1.bf16.msra.mxu0 %v162
    %187 = vmatprep.subr.bf16.mxu0 0
    %188 = vmatpush1.bf16.msra.mxu0 0
    %189 = vmatprep.subr.bf16.mxu0 0
    %190 = vmatpush1.bf16.msra.mxu0 0
    %191 = vmatprep.subr.bf16.mxu0 0
    %192 = vmatpush1.bf16.msra.mxu0 0
    %193 = vmatprep.subr.bf16.mxu0 0
    %194 = vmatpush1.bf16.msra.mxu0 0
    %195 = vmatprep.subr.bf16.mxu0 0
    %196 = vmatpush1.bf16.msra.mxu0 0
    %197 = vmatprep.subr.bf16.mxu0 0
    %198 = vmatpush1.bf16.msra.mxu0 0
    %199 = vmatprep.subr.bf16.mxu0 0
    %200 = vmatpush1.bf16.msra.mxu0 0
    %201 = vmatprep.subr.bf16.mxu0 0
    %202 = vmatpush1.bf16.msra.mxu0 0
    %203 = vmatprep.mubr.bf16.mxu0 0
    %204 = vmatmul.mubr.bf16.gmra.mrb[0].mxu0 %v99
    %v205 = vpop.f32.mrb[0].mxu0
    %v206 = vadd.f32 %v121, %v205
    %v207 = vpop.f32.mrb[0].mxu0
    %v208 = vpop.f32.mrb[0].mxu0
    %v209 = vadd.f32 %v121, %v208
    %v210 = vpop.f32.mrb[0].mxu0
    %211 = vdwg.mxu0
    %212 = vst [vmem:[#allocation7] sm:$0xff] %v206
    %213 = vst [vmem:[#allocation7 + $0x8] sm:$0xff] %v209
    // Predicated region
    $region30: #{tpu_custom_call.1} parent=1 // pred_check
      _
    $region31: #{tpu_custom_call.1} parent=1 // pred_check_branch
      %215 = sbr.rel (0) target = $region33
    $region32: #{tpu_custom_call.1} parent=1 // pred_region
      %s217 = ssub.s32 256, 256
      %218 = vsyncadd [#allocation4], %s217
      %s219 = sshll.u32 [#allocation7], 4
      %s220 = int_to_ptr.vmem [resolvable:$true] %s219
      %225 = dma.vmem_to_hbm [thread:$0]  %s220, 256, %s5, [#allocation4], 128, 128, 8
    $region33: #{tpu_custom_call.1} parent=1 // pred_fallthru
      _
    // Predicated region
    $region34: #{tpu_custom_call.1} parent=1 // pred_check
      _
    $region35: #{tpu_custom_call.1} parent=1 // pred_check_branch
      %227 = sbr.rel (0) target = $region37
    $region36: #{tpu_custom_call.1} parent=1 // pred_region
      %228 = dma.done [#allocation4], 256
    $region37: #{tpu_custom_call.1} parent=1 // pred_fallthru
      _
    %229 = vsyncpa [#allocation3], 1
    %230 = vsyncpa [#allocation6], 1
    %231 = vsyncpa [#allocation4], 1

</llo_original>
